<compile_context>
chip_gen: v7x
topology: tpu7x:2x2x1
jax: 0.10.0
libtpu: 0.0.40
codegen_flags: <defaults>
</compile_context>

<pallas_src>
import functools

import jax
import jax.numpy as jnp
from jax.experimental import pallas as pl
from jax.experimental.pallas import tpu as pltpu


def _round_up(n: int, m: int) -> int:
    return ((n + m - 1) // m) * m


def _choose_tile_b(B: int, P1: int, C: int, itemsize: int,
                   budget_bytes: int) -> int:
    """Largest batch tile whose *padded* VMEM footprint fits the budget."""
    sublane = {1: 32, 2: 16, 4: 8}.get(itemsize, 8)
    pad_p1_in = _round_up(P1, sublane)     # input-dtype sublane padding
    pad_p1_f32 = _round_up(P1, 8)          # f32 intermediates sublane padding
    pad_c = _round_up(C, 128)              # lane padding
    # Per batch row: double-buffered logits block (input dtype) + ~3 live
    # full-tile f32 intermediates (x upcast, exp(x-m), coef) + amortized
    # double-buffered 2-D targets row.
    per_row = (2 * pad_p1_in * pad_c * itemsize
               + 3 * pad_p1_f32 * pad_c * 4
               + 2 * 128 * 4)
    max_tb = max(1, budget_bytes // per_row)

    if max_tb >= B:
        # Whole batch fits one block.  Split in two equal blocks when possible
        # so ("parallel",) grid semantics can use both v7x TensorCores; costs
        # only ~0.35 us of extra grid-step overhead on v5e/v6e.
        if B >= 2 and B % 2 == 0:
            return B // 2
        return B

    max_tb = min(max_tb, B)
    # Keep the lean 2-D targets layout legal (second-minor % 8 == 0) and keep
    # the last block full-sized when a divisor of B is available.
    if max_tb >= 8:
        max_tb -= max_tb % 8
    lo = max(1, max_tb // 2)
    fallback_div = None
    for d in range(max_tb, lo - 1, -1):
        if B % d == 0:
            if d % 8 == 0:
                return d               # no mask + lean targets layout
            if fallback_div is None:
                fallback_div = d       # no mask, 3-D targets fallback
    if fallback_div is not None:
        return fallback_div
    return max_tb                      # mask emitted for the partial tail


def _ls_ce_kernel(logits_ref, targets_ref, out_ref, *,
                  smoothing: float, r: float, batch: int, num_pos: int,
                  mask_partial: bool, bf16_exp: bool):
    """Fused label-smoothing CE over one batch tile -> one partial sum.

    logits_ref : (TB, P1, C) float VMEM
    targets_ref: (TB, P1) int32 VMEM  (or (TB, P1, 1) fallback layout)
    out_ref    : (1, 8, 128) float32 VMEM (whole tile filled with the partial)
    """
    confidence = 1.0 - smoothing

    x = logits_ref[...].astype(jnp.float32)                    # (TB, P1, C)
    tb, p1, c = x.shape

    valid = None
    if mask_partial:
        # Validity mask for a partial last batch tile; also neutralizes
        # stale-VMEM garbage (possible NaN/Inf) before max/exp/log.
        b_iota = jax.lax.broadcasted_iota(jnp.int32, (tb, p1, 1), 0)
        valid = (pl.program_id(0) * tb + b_iota) < batch        # (TB, P1, 1)
        x = jnp.where(valid, x, 0.0)

    # Numerically-stable log-sum-exp pieces.
    m = jnp.max(x, axis=-1, keepdims=True)                      # (TB, P1, 1)
    z = x - m
    if bf16_exp:
        ex = jnp.exp(z.astype(jnp.bfloat16)).astype(jnp.float32)
    else:
        ex = jnp.exp(z)
    lse = jnp.log(jnp.sum(ex, axis=-1, keepdims=True))          # (TB, P1, 1)

    # Fused gather + smoothing: per_row = (m + lse) - sum(coef * x, -1)
    # with coef = confidence*onehot(target) + smoothing/C (coef sums to 1).
    t = targets_ref[...]
    tgt = t if t.ndim == 3 else t[:, :, None]                   # (TB, P1, 1)
    col = jax.lax.broadcasted_iota(jnp.int32, (tb, p1, c), 2)
    coef = jnp.where(col == tgt, confidence + smoothing / c, smoothing / c)
    s = jnp.sum(coef * x, axis=-1, keepdims=True)               # (TB, P1, 1)
    per_row = (m + lse) - s                                     # (TB, P1, 1)

    # Per-row weight so a single weighted sum equals
    # mean(class rows) + r * mean(position rows). Position 0 = class token.
    class_w = 1.0 / batch
    pos_w = (r / (batch * num_pos)) if num_pos > 0 else 0.0
    pos = jax.lax.broadcasted_iota(jnp.int32, (tb, p1, 1), 1)
    w = jnp.where(pos == 0, class_w, pos_w)
    if mask_partial:
        w = jnp.where(valid, w, 0.0)

    partial = jnp.sum(per_row * w)
    out_ref[...] = jnp.full(out_ref.shape, partial, dtype=out_ref.dtype)


def custom_loss(preds, targets, *, smoothing: float = 0.1, r: float = 10.0,
                tile_b: int | None = None, bf16_exp: bool = False,
                vmem_budget_bytes: int = 24 * 1024 * 1024,
                vmem_limit_bytes: int = 48 * 1024 * 1024):
    """Pallas implementation of CustomLoss.forward.

    preds  : (B, P+1, C) float — logits (class token at position 0)
    targets: (B, P+1)    int   — class target at position 0, positions after
    returns: scalar float32 loss = class_loss + r * pos_loss
    """
    B, P1, C = preds.shape
    P = P1 - 1
    itemsize = jnp.dtype(preds.dtype).itemsize

    if tile_b is None:
        tile_b = _choose_tile_b(B, P1, C, itemsize, vmem_budget_bytes)
    tile_b = int(max(1, min(int(tile_b), B)))
    num_blocks = (B + tile_b - 1) // tile_b
    mask_partial = (B % tile_b) != 0      # static: mask only if needed

    tgt32 = targets.astype(jnp.int32)
    # Lean 2-D targets block when its second-minor dim is tiling-legal;
    # otherwise keep the (B, P1, 1) layout (last two dims == full dims).
    if tile_b == B or tile_b % 8 == 0:
        tgt_arr = tgt32                                          # (B, P1)
        tgt_spec = pl.BlockSpec((tile_b, P1), lambda i: (i, 0))
    else:
        tgt_arr = tgt32.reshape(B, P1, 1)
        tgt_spec = pl.BlockSpec((tile_b, P1, 1), lambda i: (i, 0, 0))

    kernel = functools.partial(
        _ls_ce_kernel, smoothing=float(smoothing), r=float(r), batch=B,
        num_pos=P, mask_partial=mask_partial, bf16_exp=bool(bf16_exp))

    partials = pl.pallas_call(
        kernel,
        out_shape=jax.ShapeDtypeStruct((num_blocks, 8, 128), jnp.float32),
        grid=(num_blocks,),
        in_specs=[
            pl.BlockSpec((tile_b, P1, C), lambda i: (i, 0, 0)),
            tgt_spec,
        ],
        out_specs=pl.BlockSpec((1, 8, 128), lambda i: (i, 0, 0)),
        compiler_params=pltpu.CompilerParams(
            dimension_semantics=("parallel",),
            vmem_limit_bytes=int(vmem_limit_bytes)),
    )(preds, tgt_arr)

    # Each block broadcast its partial into a full lane-dense (8,128) tile;
    # pick one element per block and reduce in plain JAX.
    return jnp.sum(partials[:, 0, 0])


def _reference_loss(preds, targets, *, smoothing: float, r: float):
    """Pure-JAX reference mirroring the PyTorch module semantics."""
    confidence = 1.0 - smoothing

    def ls_ce(x, t):
        logprobs = jax.nn.log_softmax(x.astype(jnp.float32), axis=-1)
        nll = -jnp.take_along_axis(logprobs, t[:, None], axis=-1)[:, 0]
        smooth = -jnp.mean(logprobs, axis=-1)
        return jnp.mean(confidence * nll + smoothing * smooth)

    B, P1, C = preds.shape
    class_loss = ls_ce(preds[:, 0, :], targets[:, 0].astype(jnp.int32))
    pos_loss = ls_ce(preds[:, 1:, :].reshape(-1, C),
                     targets[:, 1:].reshape(-1).astype(jnp.int32))
    return class_loss + r * pos_loss


if __name__ == "__main__":
    smoothing, r = 0.1, 10.0
    key = jax.random.PRNGKey(0)
    k1, k2, k3, k4 = jax.random.split(key, 4)

    # Small shapes consistent with the module: B=2, num_patches+1 = 9, C = 32.
    B, P1, C = 2, 9, 32
    preds = jax.random.normal(k1, (B, P1, C), dtype=jnp.float32)
    targets = jax.random.randint(k2, (B, P1), 0, C, dtype=jnp.int32)

    loss = jax.jit(
        functools.partial(custom_loss, smoothing=smoothing, r=r))(preds, targets)
    jax.block_until_ready(loss)
    ref = _reference_loss(preds, targets, smoothing=smoothing, r=r)
    assert jnp.allclose(loss, ref, rtol=1e-5, atol=1e-5), (loss, ref)

    # Second check: batch not divisible by the forced tile to exercise the
    # static partial-tile masking path (grid=2, last block half-full) while
    # keeping the lean 2-D targets layout (tile_b % 8 == 0).
    B2 = 12
    preds2 = jax.random.normal(k3, (B2, P1, C), dtype=jnp.float32)
    targets2 = jax.random.randint(k4, (B2, P1), 0, C, dtype=jnp.int32)
    loss2 = jax.jit(functools.partial(custom_loss, smoothing=smoothing, r=r,
                                      tile_b=8))(preds2, targets2)
    jax.block_until_ready(loss2)
    ref2 = _reference_loss(preds2, targets2, smoothing=smoothing, r=r)
    assert jnp.allclose(loss2, ref2, rtol=1e-5, atol=1e-5), (loss2, ref2)

    print("KERNEL_OK")
</pallas_src>

<mosaic_0001>
module attributes {stable_mosaic.version = 11 : i64} {
  func.func @_ls_ce_kernel(%arg0: i32, %arg1: memref<1x9x32xf32, #tpu.memory_space<vmem>>, %arg2: memref<1x9x1xi32, #tpu.memory_space<vmem>>, %arg3: memref<1x8x128xf32, #tpu.memory_space<vmem>>) attributes {dimension_semantics = [#tpu.dimension_semantics<parallel>], iteration_bounds = array<i64: 2>, scalar_prefetch = 0 : i64, scratch_operands = 0 : i64, tpu.core_type = #tpu.core_type<tc>, window_params = [{transform_indices = @transform_0, window_bounds = array<i64: 1, 9, 32>}, {transform_indices = @transform_1, window_bounds = array<i64: 1, 9, 1>}, {transform_indices = @transform_2, window_bounds = array<i64: 1, 8, 128>}]} {
    %c0 = arith.constant 0 : index
    %c0_0 = arith.constant 0 : index
    %c0_1 = arith.constant 0 : index
    %0 = vector.load %arg1[%c0, %c0_0, %c0_1] : memref<1x9x32xf32, #tpu.memory_space<vmem>>, vector<1x9x32xf32>
    %cst = arith.constant dense<0xFF800000> : vector<1x9xf32>
    %1 = vector.multi_reduction <maximumf>, %0, %cst [2] : vector<1x9x32xf32> to vector<1x9xf32>
    %2 = vector.shape_cast %1 : vector<1x9xf32> to vector<1x9x1xf32>
    %3 = vector.broadcast %2 : vector<1x9x1xf32> to vector<1x9x32xf32>
    %4 = arith.subf %0, %3 : vector<1x9x32xf32>
    %5 = math.exp %4 : vector<1x9x32xf32>
    %cst_2 = arith.constant dense<0.000000e+00> : vector<1x9xf32>
    %6 = vector.multi_reduction <add>, %5, %cst_2 [2] : vector<1x9x32xf32> to vector<1x9xf32>
    %7 = vector.shape_cast %6 : vector<1x9xf32> to vector<1x9x1xf32>
    %8 = math.log %7 : vector<1x9x1xf32>
    %c0_3 = arith.constant 0 : index
    %c0_4 = arith.constant 0 : index
    %c0_5 = arith.constant 0 : index
    %9 = vector.load %arg2[%c0_3, %c0_4, %c0_5] : memref<1x9x1xi32, #tpu.memory_space<vmem>>, vector<1x9x1xi32>
    %10 = tpu.iota {dimensions = array<i32: 2>} : vector<1x9x32xi32>
    %11 = vector.broadcast %9 : vector<1x9x1xi32> to vector<1x9x32xi32>
    %12 = arith.cmpi eq, %10, %11 : vector<1x9x32xi32>
    %cst_6 = arith.constant 0.903124988 : f32
    %cst_7 = arith.constant 3.125000e-03 : f32
    %13 = vector.broadcast %cst_6 : f32 to vector<1x9x32xf32>
    %14 = vector.broadcast %cst_7 : f32 to vector<1x9x32xf32>
    %15 = arith.select %12, %13, %14 : vector<1x9x32xi1>, vector<1x9x32xf32>
    %16 = arith.mulf %15, %0 : vector<1x9x32xf32>
    %cst_8 = arith.constant dense<0.000000e+00> : vector<1x9xf32>
    %17 = vector.multi_reduction <add>, %16, %cst_8 [2] : vector<1x9x32xf32> to vector<1x9xf32>
    %18 = vector.shape_cast %17 : vector<1x9xf32> to vector<1x9x1xf32>
    %19 = arith.addf %2, %8 : vector<1x9x1xf32>
    %20 = arith.subf %19, %18 : vector<1x9x1xf32>
    %21 = tpu.iota {dimensions = array<i32: 1>} : vector<1x9x1xi32>
    %c0_i32 = arith.constant 0 : i32
    %22 = vector.broadcast %c0_i32 : i32 to vector<1x9x1xi32>
    %23 = arith.cmpi eq, %21, %22 : vector<1x9x1xi32>
    %cst_9 = arith.constant 5.000000e-01 : f32
    %cst_10 = arith.constant 6.250000e-01 : f32
    %24 = vector.broadcast %cst_9 : f32 to vector<1x9x1xf32>
    %25 = vector.broadcast %cst_10 : f32 to vector<1x9x1xf32>
    %26 = arith.select %23, %24, %25 : vector<1x9x1xi1>, vector<1x9x1xf32>
    %27 = arith.mulf %20, %26 : vector<1x9x1xf32>
    %28 = vector.shape_cast %27 : vector<1x9x1xf32> to vector<1x1x9x1xf32>
    %cst_11 = arith.constant dense<0.000000e+00> : vector<1xf32>
    %29 = vector.multi_reduction <add>, %28, %cst_11 [1, 2, 3] : vector<1x1x9x1xf32> to vector<1xf32>
    %30 = vector.shape_cast %29 : vector<1xf32> to vector<1x1x1x1xf32>
    %31 = vector.extract %30[0, 0, 0, 0] : f32 from vector<1x1x1x1xf32>
    %32 = vector.broadcast %31 : f32 to vector<1x8x128xf32>
    %c0_12 = arith.constant 0 : index
    %c0_13 = arith.constant 0 : index
    %c0_14 = arith.constant 0 : index
    %33 = vector.load %arg3[%c0_12, %c0_13, %c0_14] : memref<1x8x128xf32, #tpu.memory_space<vmem>>, vector<1x8x128xf32>
    tpu.vector_store %arg3[%c0_12, %c0_13, %c0_14], %32 {strides = array<i32>} : memref<1x8x128xf32, #tpu.memory_space<vmem>>, vector<1x8x128xf32>,
    return
  }
  func.func @transform_0(%arg0: i32) -> (i32, i32, i32) {
    %c0_i32 = arith.constant 0 : i32
    %c0_i32_0 = arith.constant 0 : i32
    %c0_i32_1 = arith.constant 0 : i32
    return %arg0, %c0_i32, %c0_i32_0 : i32, i32, i32
  }
  func.func @transform_1(%arg0: i32) -> (i32, i32, i32) {
    %c0_i32 = arith.constant 0 : i32
    %c0_i32_0 = arith.constant 0 : i32
    %c0_i32_1 = arith.constant 0 : i32
    return %arg0, %c0_i32, %c0_i32_0 : i32, i32, i32
  }
  func.func @transform_2(%arg0: i32) -> (i32, i32, i32) {
    %c0_i32 = arith.constant 0 : i32
    %c0_i32_0 = arith.constant 0 : i32
    %c0_i32_1 = arith.constant 0 : i32
    return %arg0, %c0_i32, %c0_i32_0 : i32, i32, i32
  }
}

</mosaic_0001>

<llo_original>
// kernel: custom_loss.1
$region0: #{custom_loss.1}
  #allocation0 [shape = 'u32[]', space=smem, size = 0x4, offset = 0x4, fixed_abs, tag = 'smem constant byte address 0x4 - core index']
  #allocation1 [shape = 'u32[144,128]{1,0:T(1,128)}', space=vmem, size = 0x12000, scoped, tag = 'internal scratch']
  %s0 = inlined_call_operand.vmem [shape: f32[2,9,32], index: 0, kind: input, shape index: {}]
  %s1 = inlined_call_operand.vmem [shape: s32[2,9,1], index: 1, kind: input, shape index: {}]
  %s2 = inlined_call_operand.vmem [shape: f32[2,8,128], index: 2, kind: output, shape index: {}]
  %s3 = sld [smem:[#allocation0]]
  $region41: #{custom_loss.1} parent=0
    _
  %s5 = ssub.s32 1, %s3
  %s6 = scalar_select 0, %s5, %s3
  loop: start=0, step=1, limit=4
  $region2: #{custom_loss.1} parent=0 // loop_pre_header
    _
  $region3: #{custom_loss.1} parent=0 // loop_header
    %s8 = sphi 0, %s12
    %p9 = scmp.ge.s32.totalorder %s8, 4
    %s18 = sphi 0, %s20
    %s21 = sphi 0, %s18
    %s22 = sphi 0, %s21
    %s38 = sphi 0, %s22
    %s44 = sphi 0, %s46
    %s47 = sphi 0, %s44
    %s48 = sphi 0, %s47
    %s64 = sphi 0, %s48
    %s70 = sphi 0, %s72
    %s73 = sphi 0, %s70
    %s74 = sphi 0, %s73
    %s90 = sphi 0, %s74
  $region4: #{custom_loss.1} parent=0 // loop_header_branch
    %11 = sbr.rel (%p9) target = $region8
  $region5: #{custom_loss.1} parent=0 // loop_body
    %s13 = ssub.s32 %s8, 1
    %s14 = ssub.s32 %s8, 2
    %s15 = sadd.s32 %s8, 1
    %s16 = ssub.s32 %s8, %s15
    %p17 = scmp.eq.s32.totalorder %s16, 0
    %s19 = sadd.s32 %s18, 1
    %s20 = scalar_select %p17, %s18, %s19
    %p23 = pneg %p17
    %p24 = scmp.eq.s32.totalorder %s8, 1
    %p25 = por %p23, %p24
    %p26 = scmp.ne.s32.totalorder %s18, %s21
    %p27 = scmp.eq.s32.totalorder %s8, 0
    %p28 = por %p26, %p27
    %p29 = scmp.ne.s32.totalorder %s18, %s21
    %p30 = scmp.eq.s32.totalorder %s13, 1
    %p31 = por %p29, %p30
    %p32 = scmp.ne.s32.totalorder %s21, %s22
    %p33 = scmp.eq.s32.totalorder %s13, 0
    %p34 = por %p32, %p33
    %p35 = scmp.ne.s32.totalorder %s21, %s22
    %p36 = scmp.eq.s32.totalorder %s14, 1
    %p37 = por %p35, %p36
    %p39 = scmp.ne.s32.totalorder %s22, %s38
    %p40 = scmp.eq.s32.totalorder %s14, 0
    %p41 = por %p39, %p40
    %s42 = ssub.s32 %s8, %s15
    %p43 = scmp.eq.s32.totalorder %s42, 0
    %s45 = sadd.s32 %s44, 1
    %s46 = scalar_select %p43, %s44, %s45
    %p49 = pneg %p43
    %p50 = scmp.eq.s32.totalorder %s8, 1
    %p51 = por %p49, %p50
    %p52 = scmp.ne.s32.totalorder %s44, %s47
    %p53 = scmp.eq.s32.totalorder %s8, 0
    %p54 = por %p52, %p53
    %p55 = scmp.ne.s32.totalorder %s44, %s47
    %p56 = scmp.eq.s32.totalorder %s13, 1
    %p57 = por %p55, %p56
    %p58 = scmp.ne.s32.totalorder %s47, %s48
    %p59 = scmp.eq.s32.totalorder %s13, 0
    %p60 = por %p58, %p59
    %p61 = scmp.ne.s32.totalorder %s47, %s48
    %p62 = scmp.eq.s32.totalorder %s14, 1
    %p63 = por %p61, %p62
    %p65 = scmp.ne.s32.totalorder %s48, %s64
    %p66 = scmp.eq.s32.totalorder %s14, 0
    %p67 = por %p65, %p66
    %s68 = ssub.s32 %s8, %s15
    %p69 = scmp.eq.s32.totalorder %s68, 0
    %s71 = sadd.s32 %s70, 1
    %s72 = scalar_select %p69, %s70, %s71
    %p75 = pneg %p69
    %p76 = scmp.eq.s32.totalorder %s8, 1
    %p77 = por %p75, %p76
    %p78 = scmp.ne.s32.totalorder %s70, %s73
    %p79 = scmp.eq.s32.totalorder %s8, 0
    %p80 = por %p78, %p79
    %p81 = scmp.ne.s32.totalorder %s70, %s73
    %p82 = scmp.eq.s32.totalorder %s13, 1
    %p83 = por %p81, %p82
    %p84 = scmp.ne.s32.totalorder %s73, %s74
    %p85 = scmp.eq.s32.totalorder %s13, 0
    %p86 = por %p84, %p85
    %p87 = scmp.ne.s32.totalorder %s73, %s74
    %p88 = scmp.eq.s32.totalorder %s14, 1
    %p89 = por %p87, %p88
    %p91 = scmp.ne.s32.totalorder %s74, %s90
    %p92 = scmp.eq.s32.totalorder %s14, 0
    %p93 = por %p91, %p92
    %p94 = scmp.le.s32.totalorder 1, %s8
    %p95 = scmp.lt.s32.totalorder %s8, 3
    %p96 = pnand %p94, %p95
    %p97 = pneg %p96
    // Predicated region
    $region9: #{custom_loss.1} parent=5 // pred_check
      _
    $region10: #{custom_loss.1} parent=5 // pred_check_branch
      %99 = sbr.rel (%p96) target = $region12
    $region11: #{custom_loss.1} parent=5 // pred_region
      %s100 = ssub.s32 %s8, 1
    $region12: #{custom_loss.1} parent=5 // pred_fallthru
      _
    %p101 = scmp.lt.s32.totalorder %s8, 2
    // Predicated region
    $region13: #{custom_loss.1} parent=5 // pred_check
      %p102 = pneg %p101
    $region14: #{custom_loss.1} parent=5 // pred_check_branch
      %104 = sbr.rel (%p102) target = $region16
    $region15: #{custom_loss.1} parent=5 // pred_region
      // Predicated region
      $region17: #{custom_loss.1} parent=15 // pred_check
        %p105 = pneg %p28
      $region18: #{custom_loss.1} parent=15 // pred_check_branch
        %107 = sbr.rel (%p105) target = $region20
      $region19: #{custom_loss.1} parent=15 // pred_region
        %p108 = scmp.lt.s32.totalorder %s8, 1
        %s109 = scalar_select %p108, %s8, 1
        %s110 = smul.addr %s109, 2
        %s111 = smul.addr %s110, 8
        %s112 = scalar_lea.vmem %s0, %s111
      $region20: #{custom_loss.1} parent=15 // pred_fallthru
        _
      // Predicated region
      $region21: #{custom_loss.1} parent=15 // pred_check
        %p113 = pneg %p54
      $region22: #{custom_loss.1} parent=15 // pred_check_branch
        %115 = sbr.rel (%p113) target = $region24
      $region23: #{custom_loss.1} parent=15 // pred_region
        %p116 = scmp.lt.s32.totalorder %s8, 1
        %s117 = scalar_select %p116, %s8, 1
        %s118 = smul.addr %s117, 2
        %s119 = smul.addr %s118, 8
        %s120 = scalar_lea.vmem %s1, %s119
      $region24: #{custom_loss.1} parent=15 // pred_fallthru
        _
    $region16: #{custom_loss.1} parent=5 // pred_fallthru
      _
    %p121 = scmp.le.s32.totalorder 1, %s8
    %p122 = scmp.lt.s32.totalorder %s8, 3
    %p123 = pnand %p121, %p122
    %p124 = pneg %p123
    // Predicated region
    $region25: #{custom_loss.1} parent=5 // pred_check
      _
    $region26: #{custom_loss.1} parent=5 // pred_check_branch
      %126 = sbr.rel (%p123) target = $region28
    $region27: #{custom_loss.1} parent=5 // pred_region
      %s127 = ssub.s32 %s8, 1
      %p128 = scmp.lt.s32.totalorder %s13, 1
      %s129 = scalar_select %p128, %s13, 1
      %s130 = smul.addr %s129, 2
      %s131 = smul.addr %s130, 8
      %s132 = scalar_lea.vmem %s0, %s131
      %p133 = pneg %p34
      %p134 = pneg %p31
      %p135 = scmp.lt.s32.totalorder %s13, 1
      %s136 = scalar_select %p135, %s13, 1
      %s137 = smul.addr %s136, 2
      %s138 = smul.addr %s137, 8
      %s139 = scalar_lea.vmem %s1, %s138
      %p140 = pneg %p60
      %p141 = pneg %p57
      %p142 = pneg %p86
      %p143 = pneg %p83
      %p144 = scmp.lt.s32.totalorder %s13, 1
      %s145 = scalar_select %p144, %s13, 1
      %s146 = smul.addr %s145, 8
      %s147 = scalar_lea.vmem %s2, %s146
      %p148 = scmp.lt.s32.totalorder %s13, 1
      %s149 = scalar_select %p148, %s13, 1
      %s150 = smul.addr %s149, 2
      %s151 = smul.addr %s150, 8
      %s152 = scalar_lea.vmem %s0, %s151
      %p153 = scmp.lt.s32.totalorder %s13, 1
      %s154 = scalar_select %p153, %s13, 1
      %s155 = smul.addr %s154, 2
      %s156 = smul.addr %s155, 8
      %s157 = scalar_lea.vmem %s1, %s156
      %p158 = scmp.lt.s32.totalorder %s13, 1
      %s159 = scalar_select %p158, %s13, 1
      %s160 = smul.addr %s159, 8
      %s161 = scalar_lea.vmem %s2, %s160
      %v162 = vld [vmem:[%s152] sm:$0xff]
      %v163 = vld [vmem:[%s152 + $0x8] sm:$0x1]
      %vm164 = vcmask 261120
      %v165 = vsel %vm164, %v162, -inf
      %166 = vmax.xlane.f32.xlu0 %v165
      %v167 = vpop.xlane.xlu0 %166
      %vm168 = vcmask 253952
      %v169 = vsel %vm168, %v163, -inf
      %170 = vmax.xlane.f32.xlu0 %v169
      %v171 = vpop.xlane.xlu0 %170
      %v172 = vsub.f32 %v162, %v167
      %v173 = vsub.f32 %v163, %v171
      %v174 = vmul.f32 %v172, 1.442695
      %v175 = vpow.pop %v174
      %v176 = vmul.f32 %v173, 1.442695
      %v177 = vpow.pop %v176
      %v178 = vsel %vm164, %v175, 0.0
      %179 = vadd.xlane.f32.xlu0 %v178
      %v180 = vpop.xlane.xlu0 %179
      %v181 = vsel %vm168, %v177, 0.0
      %182 = vadd.xlane.f32.xlu0 %v181
      %v183 = vpop.xlane.xlu0 %182
      %v184 = vlog2.pop %v180
      %v185 = vmul.f32 %v184, 0.6931472
      %v186 = vlog2.pop %v183
      %v187 = vmul.f32 %v186, 0.6931472
      %v188 = vld [vmem:[%s157] sm:$0xff]
      %v189 = vld [vmem:[%s157 + $0x8] sm:$0x1]
      %v190 = vlaneseq
      %v191 = vand.u32 %v190, 127
      %192 = vset.pattern.permute.xlu0 0
      %193 = vperm.xlu0 %192, %v188
      %v194 = vpop.permute.xlu0 %193
      %195 = vset.pattern.permute.xlu0 0
      %196 = vperm.xlu0 %195, %v189
      %v197 = vpop.permute.xlu0 %196
      %vm198 = vcmp.eq.s32.totalorder %v191, %v194
      %vm199 = vcmp.eq.s32.totalorder %v191, %v197
      %v200 = vsel %vm198, 0.903125, 0.003125
      %v201 = vsel %vm199, 0.903125, 0.003125
      %v202 = vmul.f32 %v200, %v162
      %v203 = vmul.f32 %v201, %v163
      %v204 = vsel %vm164, %v202, 0.0
      %205 = vadd.xlane.f32.xlu0 %v204
      %v206 = vpop.xlane.xlu0 %205
      %v207 = vsel %vm168, %v203, 0.0
      %208 = vadd.xlane.f32.xlu0 %v207
      %v209 = vpop.xlane.xlu0 %208
      %v210 = vadd.f32 %v167, %v185
      %v211 = vadd.f32 %v171, %v187
      %v212 = vsub.f32 %v210, %v206
      %v213 = vsub.f32 %v211, %v209
      %v214 = vlaneseq
      %v215 = vshrl.u32 %v214, 7
      %v216 = vadd.s32 %v215, 8
      %vm217 = vcmp.eq.s32.totalorder %v215, 0
      %vm218 = vcmp.eq.s32.totalorder %v216, 0
      %v219 = vsel %vm217, 0.5, 0.625
      %v220 = vsel %vm218, 0.5, 0.625
      %v221 = vmul.f32 %v212, %v219
      %v222 = vmul.f32 %v213, %v220
      %vm223 = vcmask 7168
      %v224 = vsel %vm223, %v221, 0.0
      %vm225 = vcmask 0
      %v226 = vsel %vm225, %v222, 0.0
      %v227 = vadd.f32 %v224, %v226
      %228 = vadd.xlane.f32.xlu0 %v227
      %v229 = vpop.xlane.xlu0 %228
      %v230 = vrot.slane %v229, 4
      %v231 = vadd.f32 %v229, %v230
      %v232 = vrot.slane %v231, 2
      %v233 = vadd.f32 %v231, %v232
      %v234 = vrot.slane %v233, 1
      %v235 = vadd.f32 %v233, %v234
      %s236 = vtos %v235
      %v237 = vstv %s236
      %238 = vst [vmem:[%s161] sm:$0xff] %v237
      %p239 = scmp.lt.s32.totalorder %s13, 1
      %s240 = scalar_select %p239, %s13, 1
      %s241 = smul.addr %s240, 8
      %s242 = scalar_lea.vmem %s2, %s241
      // Predicated region
      $region29: #{custom_loss.1} parent=27 // pred_check
        %p243 = pneg %p83
      $region30: #{custom_loss.1} parent=27 // pred_check_branch
        %245 = sbr.rel (%p243) target = $region32
      $region31: #{custom_loss.1} parent=27 // pred_region
        _
      $region32: #{custom_loss.1} parent=27 // pred_fallthru
        _
    $region28: #{custom_loss.1} parent=5 // pred_fallthru
      _
    %p246 = scmp.le.s32.totalorder 2, %s8
    // Predicated region
    $region33: #{custom_loss.1} parent=5 // pred_check
      %p247 = pneg %p246
    $region34: #{custom_loss.1} parent=5 // pred_check_branch
      %249 = sbr.rel (%p247) target = $region36
    $region35: #{custom_loss.1} parent=5 // pred_region
      %s250 = ssub.s32 %s8, 2
      // Predicated region
      $region37: #{custom_loss.1} parent=35 // pred_check
        %p251 = pneg %p89
      $region38: #{custom_loss.1} parent=35 // pred_check_branch
        %253 = sbr.rel (%p251) target = $region40
      $region39: #{custom_loss.1} parent=35 // pred_region
        %p254 = scmp.lt.s32.totalorder %s14, 1
        %s255 = scalar_select %p254, %s14, 1
        %s256 = smul.addr %s255, 8
        %s257 = scalar_lea.vmem %s2, %s256
      $region40: #{custom_loss.1} parent=35 // pred_fallthru
        _
    $region36: #{custom_loss.1} parent=5 // pred_fallthru
      _
  $region6: #{custom_loss.1} parent=0 // loop_footer
    %s12 = sadd.s32 1, %s8
  $region7: #{custom_loss.1} parent=0 // loop_footer_branch
    %7 = sbr.rel target = $region3
  $region8: #{custom_loss.1} parent=0 // loop_exit
    _

</llo_original>
